<compile_context>
chip_gen: v6e
topology: v6e:2x2x1
jax: 0.10.0
libtpu: 0.0.40
codegen_flags: <defaults>
</compile_context>

<pallas_src>
from functools import partial

import jax
import jax.numpy as jnp
from jax.experimental import pallas as pl
from jax.experimental.pallas import tpu as pltpu


def _round_up(x, m):
    return ((x + m - 1) // m) * m


def _sublane(dtype):
    # native sublane tile: f32 -> 8, bf16 -> 16, int8/fp8 -> 32
    return max(8, 32 // jnp.dtype(dtype).itemsize)


def _pad_cast(a, shape, dtype):
    """Cast + zero-pad only when actually needed (no-op for aligned inputs)."""
    a = a.astype(dtype)
    if a.shape == shape:
        return a
    return jnp.zeros(shape, dtype).at[: a.shape[0], : a.shape[1]].set(a)


def _encoder_kernel_fused(x_ref, w_ref, b_ref, o_ref, *, compute_dtype):
    """Single-K-block path: whole reduction in one MXU call, no scratch.

    x is kept in its stored dtype in HBM/VMEM and cast here (cheap VPU work
    hidden under the MXU / DMA) instead of materializing a casted copy in HBM.
    """
    x = x_ref[...].astype(compute_dtype)
    acc = jnp.dot(x, w_ref[...], preferred_element_type=jnp.float32)
    acc = acc + b_ref[...]                      # bias kept in f32
    o_ref[...] = jnp.maximum(acc, 0.0).astype(o_ref.dtype)


def _encoder_kernel_kloop(x_ref, w_ref, b_ref, o_ref, acc_ref, *, compute_dtype):
    """Fallback path for large K: accumulate over the (arbitrary) K grid axis."""
    k = pl.program_id(2)

    @pl.when(k == 0)
    def _():
        acc_ref[...] = jnp.zeros_like(acc_ref)

    x = x_ref[...].astype(compute_dtype)
    acc_ref[...] += jnp.dot(x, w_ref[...], preferred_element_type=jnp.float32)

    @pl.when(k == pl.num_programs(2) - 1)
    def _():
        out = acc_ref[...] + b_ref[...]
        o_ref[...] = jnp.maximum(out, 0.0).astype(o_ref.dtype)


@partial(jax.jit, static_argnames=("tm", "tn", "tk_fold_max",
                                   "compute_dtype", "out_dtype"))
def encoder_forward(x, w, b, *, tm=256, tn=256, tk_fold_max=None,
                    compute_dtype=jnp.bfloat16, out_dtype=jnp.float32):
    """relu(x @ w + b) via a tiled Pallas matmul kernel.

    x: (N, K), w: (K, H), b: (1, H) or (H,)  ->  (N, H) in `out_dtype`.
    Arbitrary (ragged) N/K/H are supported via zero-padding.  The matmul runs
    in `compute_dtype` on the MXU with f32 accumulation.
    """
    n, k = x.shape
    kw, h = w.shape
    assert kw == k, f"shape mismatch: x {x.shape} vs w {w.shape}"
    b = jnp.asarray(b).reshape(1, h)

    x_bytes = jnp.dtype(x.dtype).itemsize
    w_bytes = jnp.dtype(compute_dtype).itemsize
    out_bytes = jnp.dtype(out_dtype).itemsize

    # Row-tile multiple must satisfy the sublane tiling of both the stored x
    # dtype and the output dtype (bf16 -> 16, f32 -> 8).
    row_mult = max(_sublane(x.dtype), _sublane(out_dtype))

    # Clamp tiles to the (hw-aligned) problem size so tiny inputs don't over-pad.
    tm = _round_up(min(tm, _round_up(n, row_mult)), row_mult)
    tn = min(tn, _round_up(h, 128))
    n_pad = _round_up(n, tm)
    h_pad = _round_up(h, tn)

    # Shrink tm when the tail padding would waste >25% of the padded rows
    # (e.g. n=300: tm=256 pads 212 rows, tm=128 pads 84).
    if tm > 128 and (n_pad - n) * 4 > n_pad:
        tm_small = _round_up(max(row_mult, tm // 2), row_mult)
        if _round_up(n, tm_small) < n_pad:
            tm = tm_small
            n_pad = _round_up(n, tm)

    # v7x has 2 TensorCores sharded over the parallel grid axes: make sure the
    # grid has >= 2 programs whenever the problem allows it.
    if n_pad // tm == 1 and h_pad // tn == 1 and n_pad >= 2 * row_mult:
        tm = _round_up(max(row_mult, -(-n_pad // 2)), row_mult)
        n_pad = _round_up(n, tm)

    # K handling: fold the whole reduction into one block when it fits the
    # VMEM budget (threshold depends on the matmul-input byte width), else
    # pipeline a k-loop with a large (2048) K tile.
    if tk_fold_max is None:
        tk_fold_max = 4096 if w_bytes <= 2 else 2048
    k_aligned = _round_up(k, 128)
    single_k = k_aligned <= tk_fold_max
    if single_k:
        tk = k_aligned                      # fold the entire reduction
        k_pad = k_aligned
    else:
        tk = 2048                           # pipelined K reduction
        k_pad = _round_up(k, tk)

    # Scoped-VMEM budget: double-buffered inputs/outputs + accumulator scratch,
    # with 2x headroom, capped at 48 MiB (safe on v5e/v6e 128 MiB and v7x 64 MiB).
    ws = (2 * (tm * tk * x_bytes + tk * tn * w_bytes + tm * tn * out_bytes)
          + tm * tn * 4 + 2 * tn * 4)
    vmem_limit = int(min(max(2 * ws, 16 << 20), 48 << 20))

    # Zero-pad ONLY when needed (aligned shapes pass straight through). Zeros
    # along K contribute nothing to the dot, so padding never contaminates
    # real outputs; padded rows/cols are sliced off below (fused under jit).
    x_p = _pad_cast(x, (n_pad, k_pad), x.dtype)          # keep stored dtype
    w_p = _pad_cast(w, (k_pad, h_pad), compute_dtype)    # small, cast once
    b_p = _pad_cast(b, (1, h_pad), jnp.float32)

    if single_k:
        out = pl.pallas_call(
            partial(_encoder_kernel_fused, compute_dtype=compute_dtype),
            out_shape=jax.ShapeDtypeStruct((n_pad, h_pad), out_dtype),
            grid_spec=pltpu.PrefetchScalarGridSpec(
                num_scalar_prefetch=0,
                grid=(n_pad // tm, h_pad // tn),
                in_specs=[
                    pl.BlockSpec((tm, tk), lambda i, j: (i, 0)),
                    pl.BlockSpec((tk, tn), lambda i, j: (0, j)),
                    pl.BlockSpec((1, tn), lambda i, j: (0, j)),
                ],
                out_specs=pl.BlockSpec((tm, tn), lambda i, j: (i, j)),
            ),
            compiler_params=pltpu.CompilerParams(
                dimension_semantics=("parallel", "parallel"),
                vmem_limit_bytes=vmem_limit),
        )(x_p, w_p, b_p)
    else:
        out = pl.pallas_call(
            partial(_encoder_kernel_kloop, compute_dtype=compute_dtype),
            out_shape=jax.ShapeDtypeStruct((n_pad, h_pad), out_dtype),
            grid_spec=pltpu.PrefetchScalarGridSpec(
                num_scalar_prefetch=0,
                grid=(n_pad // tm, h_pad // tn, k_pad // tk),
                in_specs=[
                    pl.BlockSpec((tm, tk), lambda i, j, kk: (i, kk)),
                    pl.BlockSpec((tk, tn), lambda i, j, kk: (kk, j)),
                    pl.BlockSpec((1, tn), lambda i, j, kk: (0, j)),
                ],
                out_specs=pl.BlockSpec((tm, tn), lambda i, j, kk: (i, j)),
                scratch_shapes=[pltpu.VMEM((tm, tn), jnp.float32)],
            ),
            compiler_params=pltpu.CompilerParams(
                dimension_semantics=("parallel", "parallel", "arbitrary"),
                vmem_limit_bytes=vmem_limit),
        )(x_p, w_p, b_p)

    return out[:n, :h]


@partial(jax.jit, static_argnames=("compute_dtype", "out_dtype"))
def _gather_encode(x, rows, w, b, *, compute_dtype, out_dtype):
    # Gather the requested rows inside the jit so it fuses with padding and
    # the kernel dispatch instead of materializing an HBM intermediate.
    x = jnp.take(x, rows, axis=0)
    return encoder_forward(x, w, b,
                           compute_dtype=compute_dtype, out_dtype=out_dtype)


class PallasRecommender:
    """JAX/Pallas analogue of BaseRecommender wrapping a dense encoder."""

    def __init__(self, w, b, *, compute_dtype=jnp.bfloat16,
                 out_dtype=jnp.float32):
        self.w = w
        self.b = b
        self.compute_dtype = compute_dtype
        self.out_dtype = out_dtype

    def encoder(self, feat_dict, rows=None):
        # "g" (graph structure) is not used by this synthetic dense encoder.
        x = feat_dict["paper"]
        if rows is None:
            return encoder_forward(
                x, self.w, self.b,
                compute_dtype=self.compute_dtype, out_dtype=self.out_dtype)
        return _gather_encode(
            x, rows, self.w, self.b,
            compute_dtype=self.compute_dtype, out_dtype=self.out_dtype)

    def get_embeddings(self, feat_dict, paper_idx=None):
        return self.encoder(feat_dict, rows=paper_idx)


if __name__ == "__main__":
    n_papers, in_dim, hidden_dim = 256, 256, 128

    key = jax.random.PRNGKey(0)
    k_feat, k_w, k_b = jax.random.split(key, 3)

    feat_dict = {
        "paper": jax.random.normal(k_feat, (n_papers, in_dim), dtype=jnp.float32)
    }
    w = jax.random.normal(k_w, (in_dim, hidden_dim), dtype=jnp.float32) * 0.02
    b = jax.random.normal(k_b, (1, hidden_dim), dtype=jnp.float32) * 0.01

    paper_idx = jnp.array([0, 3, 7, 11, 42, 100, 200, 255], dtype=jnp.int32)

    ref = jnp.maximum(feat_dict["paper"] @ w + b, 0.0)

    # --- default path: bf16 MXU inputs, f32 accumulation ---
    model = PallasRecommender(w, b)
    emb_all = jax.block_until_ready(model.get_embeddings(feat_dict))
    emb_sub = jax.block_until_ready(
        model.get_embeddings(feat_dict, paper_idx=paper_idx))
    assert emb_all.shape == (n_papers, hidden_dim)
    assert emb_sub.shape == (paper_idx.shape[0], hidden_dim)
    assert jnp.allclose(emb_all, ref, atol=5e-2, rtol=5e-2)
    assert jnp.allclose(emb_sub, ref[paper_idx], atol=5e-2, rtol=5e-2)

    # --- f32 compute path (bit-faithful to the PyTorch module) ---
    model_f32 = PallasRecommender(w, b, compute_dtype=jnp.float32)
    emb_f32 = jax.block_until_ready(model_f32.get_embeddings(feat_dict))
    emb_f32_sub = jax.block_until_ready(
        model_f32.get_embeddings(feat_dict, paper_idx=paper_idx))
    assert jnp.allclose(emb_f32, ref, atol=1e-4, rtol=1e-4)
    assert jnp.allclose(emb_f32_sub, ref[paper_idx], atol=1e-4, rtol=1e-4)

    # --- ragged-shape path, f32 (exercises zero-padding + k-loop fallback) ---
    xr = jax.random.normal(key, (100, 3000), dtype=jnp.float32)
    wr = jax.random.normal(k_w, (3000, 70), dtype=jnp.float32) * 0.02
    br = jax.random.normal(k_b, (1, 70), dtype=jnp.float32) * 0.01
    out_r = jax.block_until_ready(
        encoder_forward(xr, wr, br, compute_dtype=jnp.float32))
    ref_r = jnp.maximum(xr @ wr + br, 0.0)
    assert out_r.shape == (100, 70)
    assert jnp.allclose(out_r, ref_r, atol=1e-3, rtol=1e-3)

    # --- ragged-shape path, bf16 (K=3000 folds into a single MXU block) ---
    out_rb = jax.block_until_ready(encoder_forward(xr, wr, br))
    assert out_rb.shape == (100, 70)
    assert jnp.allclose(out_rb, ref_r, atol=5e-2, rtol=5e-2)

    print("KERNEL_OK")
</pallas_src>

<mosaic_0001>
module attributes {stable_mosaic.version = 11 : i64} {
  func.func @_encoder_kernel_fused(%arg0: i32, %arg1: i32, %arg2: memref<128x256xf32, #tpu.memory_space<vmem>>, %arg3: memref<256x128xbf16, #tpu.memory_space<vmem>>, %arg4: memref<1x128xf32, #tpu.memory_space<vmem>>, %arg5: memref<128x128xf32, #tpu.memory_space<vmem>>) attributes {dimension_semantics = [#tpu.dimension_semantics<parallel>, #tpu.dimension_semantics<parallel>], iteration_bounds = array<i64: 2, 1>, scalar_prefetch = 0 : i64, scratch_operands = 0 : i64, tpu.core_type = #tpu.core_type<tc>, window_params = [{transform_indices = @transform_0, window_bounds = array<i64: 128, 256>}, {transform_indices = @transform_1, window_bounds = array<i64: 256, 128>}, {transform_indices = @transform_2, window_bounds = array<i64: 1, 128>}, {transform_indices = @transform_3, window_bounds = array<i64: 128, 128>}]} {
    %c0 = arith.constant 0 : index
    %c0_0 = arith.constant 0 : index
    %0 = vector.load %arg2[%c0, %c0_0] : memref<128x256xf32, #tpu.memory_space<vmem>>, vector<128x256xf32>
    %1 = arith.truncf %0 : vector<128x256xf32> to vector<128x256xbf16>
    %c0_1 = arith.constant 0 : index
    %c0_2 = arith.constant 0 : index
    %2 = vector.load %arg3[%c0_1, %c0_2] : memref<256x128xbf16, #tpu.memory_space<vmem>>, vector<256x128xbf16>
    %cst = arith.constant dense<0.000000e+00> : vector<128x128xf32>
    %3 = tpu.matmul %1, %2, %cst {dimension_numbers = #tpu.dot_dimension_numbers<[1], [0], [0], [1], [0, 0, 1, 1], [], []>} : vector<128x256xbf16>, vector<256x128xbf16>, vector<128x128xf32> -> vector<128x128xf32>
    %c0_3 = arith.constant 0 : index
    %c0_4 = arith.constant 0 : index
    %4 = vector.load %arg4[%c0_3, %c0_4] : memref<1x128xf32, #tpu.memory_space<vmem>>, vector<1x128xf32>
    %5 = vector.broadcast %4 : vector<1x128xf32> to vector<128x128xf32>
    %6 = arith.addf %3, %5 : vector<128x128xf32>
    %cst_5 = arith.constant 0.000000e+00 : f32
    %7 = vector.broadcast %cst_5 : f32 to vector<128x128xf32>
    %8 = arith.maximumf %6, %7 : vector<128x128xf32>
    %c0_6 = arith.constant 0 : index
    %c0_7 = arith.constant 0 : index
    %9 = vector.load %arg5[%c0_6, %c0_7] : memref<128x128xf32, #tpu.memory_space<vmem>>, vector<128x128xf32>
    tpu.vector_store %arg5[%c0_6, %c0_7], %8 {strides = array<i32>} : memref<128x128xf32, #tpu.memory_space<vmem>>, vector<128x128xf32>,
    return
  }
  func.func @transform_0(%arg0: i32, %arg1: i32) -> (i32, i32) {
    %c0_i32 = arith.constant 0 : i32
    %c0_i32_0 = arith.constant 0 : i32
    return %arg0, %c0_i32 : i32, i32
  }
  func.func @transform_1(%arg0: i32, %arg1: i32) -> (i32, i32) {
    %c0_i32 = arith.constant 0 : i32
    %c0_i32_0 = arith.constant 0 : i32
    return %c0_i32, %arg1 : i32, i32
  }
  func.func @transform_2(%arg0: i32, %arg1: i32) -> (i32, i32) {
    %c0_i32 = arith.constant 0 : i32
    %c0_i32_0 = arith.constant 0 : i32
    return %c0_i32, %arg1 : i32, i32
  }
  func.func @transform_3(%arg0: i32, %arg1: i32) -> (i32, i32) {
    %c0_i32 = arith.constant 0 : i32
    return %arg0, %arg1 : i32, i32
  }
}

</mosaic_0001>

<llo_original>
// kernel: encoder_forward.1
$region0: #{encoder_forward.1}
  #allocation0 [shape = 'u32[]', space=smem, size = 0x4, offset = 0x4, fixed_abs, tag = 'smem constant byte address 0x4 - core index']
  #allocation1 [shape = 'u32[144,128]{1,0:T(1,128)}', space=vmem, size = 0x12000, scoped, tag = 'internal scratch']
  %s0 = inlined_call_operand.hbm [shape: f32[256,256], index: 0, kind: input, shape index: {}]
  %s1 = inlined_call_operand.vmem [shape: bf16[256,128], index: 1, kind: input, shape index: {}]
  %s2 = inlined_call_operand.vmem [shape: f32[1,128], index: 2, kind: input, shape index: {}]
  %s3 = inlined_call_operand.hbm [shape: f32[256,128], index: 3, kind: output, shape index: {}]
  %s4 = sld [smem:[#allocation0]]
  $region49: #{encoder_forward.1} parent=0
    _
  %s6 = ssub.s32 1, %s4
  %s7 = scalar_select 0, %s6, %s4
  $region1: #{encoder_forward.1} parent=0
    #allocation2 [shape = 'u8[262144]{0}', space=vmem, size = 0x40000, scoped, tag = 'input window, operand 0']
    #allocation3 [shape = 's32[2]{0}', space=sflag, size = 0x8, scoped, tag = 'scoped memory for encoder_forward.1']
    #allocation4 [shape = 's32[2]{0}', space=sflag, size = 0x8, scoped, tag = 'scoped memory for encoder_forward.1']
    #allocation5 [shape = 'u8[131072]{0}', space=vmem, size = 0x20000, scoped, tag = 'output window, operand 0']
    %8 = vsyncpa [#allocation3], 0
    %s9 = scalar_lea.sflag [#allocation3], 1
    %10 = vsyncpa %s9, 0
    %11 = vsyncpa [#allocation4], 0
    %s12 = scalar_lea.sflag [#allocation4], 1
    %13 = vsyncpa %s12, 0
    loop: start=0, step=1, limit=4
    $region2: #{encoder_forward.1} parent=1 // loop_pre_header
      _
    $region3: #{encoder_forward.1} parent=1 // loop_header
      %s15 = sphi 0, %s19
      %p16 = scmp.ge.s32.totalorder %s15, 4
      %s22 = sphi 0, %s34
      %s23 = sphi 0, %s30
      %s24 = sphi 0, %s22
      %s25 = sphi 0, %s23
      %s26 = sphi 0, %s24
      %s27 = sphi 0, %s25
      %s37 = sphi 0, %s39
      %s40 = sphi 0, %s37
      %s41 = sphi 0, %s40
      %s57 = sphi 0, %s41
      %s63 = sphi 0, %s65
      %s66 = sphi 0, %s63
      %s67 = sphi 0, %s66
      %s83 = sphi 0, %s67
      %s89 = sphi 0, %s91
      %s92 = sphi 0, %s89
      %s93 = sphi 0, %s92
      %s109 = sphi 0, %s93
      %s117 = sphi 0, %s119
      %s120 = sphi 0, %s117
      %s121 = sphi 0, %s120
      %s137 = sphi 0, %s121
    $region4: #{encoder_forward.1} parent=1 // loop_header_branch
      %18 = sbr.rel (%p16) target = $region8
    $region5: #{encoder_forward.1} parent=1 // loop_body
      %s20 = ssub.s32 %s15, 1
      %s21 = ssub.s32 %s15, 2
      %s28 = sadd.s32 1, %s23
      %p29 = scmp.ge.s32.totalorder %s28, 1
      %s30 = scalar_select %p29, 0, %s28
      %s31 = sadd.s32 1, %s22
      %s32 = scalar_select %p29, %s31, %s22
      %p33 = scmp.ge.s32.totalorder %s32, 2
      %s34 = scalar_select %p33, 0, %s32
      %s35 = ssub.s32 %s22, %s34
      %p36 = scmp.eq.s32.totalorder %s35, 0
      %s38 = sadd.s32 %s37, 1
      %s39 = scalar_select %p36, %s37, %s38
      %p42 = pneg %p36
      %p43 = scmp.eq.s32.totalorder %s15, 1
      %p44 = por %p42, %p43
      %p45 = scmp.ne.s32.totalorder %s37, %s40
      %p46 = scmp.eq.s32.totalorder %s15, 0
      %p47 = por %p45, %p46
      %p48 = scmp.ne.s32.totalorder %s37, %s40
      %p49 = scmp.eq.s32.totalorder %s20, 1
      %p50 = por %p48, %p49
      %p51 = scmp.ne.s32.totalorder %s40, %s41
      %p52 = scmp.eq.s32.totalorder %s20, 0
      %p53 = por %p51, %p52
      %p54 = scmp.ne.s32.totalorder %s40, %s41
      %p55 = scmp.eq.s32.totalorder %s21, 1
      %p56 = por %p54, %p55
      %p58 = scmp.ne.s32.totalorder %s41, %s57
      %p59 = scmp.eq.s32.totalorder %s21, 0
      %p60 = por %p58, %p59
      %s61 = ssub.s32 %s23, %s30
      %p62 = scmp.eq.s32.totalorder %s61, 0
      %s64 = sadd.s32 %s63, 1
      %s65 = scalar_select %p62, %s63, %s64
      %p68 = pneg %p62
      %p69 = scmp.eq.s32.totalorder %s15, 1
      %p70 = por %p68, %p69
      %p71 = scmp.ne.s32.totalorder %s63, %s66
      %p72 = scmp.eq.s32.totalorder %s15, 0
      %p73 = por %p71, %p72
      %p74 = scmp.ne.s32.totalorder %s63, %s66
      %p75 = scmp.eq.s32.totalorder %s20, 1
      %p76 = por %p74, %p75
      %p77 = scmp.ne.s32.totalorder %s66, %s67
      %p78 = scmp.eq.s32.totalorder %s20, 0
      %p79 = por %p77, %p78
      %p80 = scmp.ne.s32.totalorder %s66, %s67
      %p81 = scmp.eq.s32.totalorder %s21, 1
      %p82 = por %p80, %p81
      %p84 = scmp.ne.s32.totalorder %s67, %s83
      %p85 = scmp.eq.s32.totalorder %s21, 0
      %p86 = por %p84, %p85
      %s87 = ssub.s32 %s23, %s30
      %p88 = scmp.eq.s32.totalorder %s87, 0
      %s90 = sadd.s32 %s89, 1
      %s91 = scalar_select %p88, %s89, %s90
      %p94 = pneg %p88
      %p95 = scmp.eq.s32.totalorder %s15, 1
      %p96 = por %p94, %p95
      %p97 = scmp.ne.s32.totalorder %s89, %s92
      %p98 = scmp.eq.s32.totalorder %s15, 0
      %p99 = por %p97, %p98
      %p100 = scmp.ne.s32.totalorder %s89, %s92
      %p101 = scmp.eq.s32.totalorder %s20, 1
      %p102 = por %p100, %p101
      %p103 = scmp.ne.s32.totalorder %s92, %s93
      %p104 = scmp.eq.s32.totalorder %s20, 0
      %p105 = por %p103, %p104
      %p106 = scmp.ne.s32.totalorder %s92, %s93
      %p107 = scmp.eq.s32.totalorder %s21, 1
      %p108 = por %p106, %p107
      %p110 = scmp.ne.s32.totalorder %s93, %s109
      %p111 = scmp.eq.s32.totalorder %s21, 0
      %p112 = por %p110, %p111
      %s113 = ssub.s32 %s22, %s34
      %s114 = ssub.s32 %s23, %s30
      %s115 = sor.u32 %s113, %s114
      %p116 = scmp.eq.s32.totalorder %s115, 0
      %s118 = sadd.s32 %s117, 1
      %s119 = scalar_select %p116, %s117, %s118
      %p122 = pneg %p116
      %p123 = scmp.eq.s32.totalorder %s15, 1
      %p124 = por %p122, %p123
      %p125 = scmp.ne.s32.totalorder %s117, %s120
      %p126 = scmp.eq.s32.totalorder %s15, 0
      %p127 = por %p125, %p126
      %p128 = scmp.ne.s32.totalorder %s117, %s120
      %p129 = scmp.eq.s32.totalorder %s20, 1
      %p130 = por %p128, %p129
      %p131 = scmp.ne.s32.totalorder %s120, %s121
      %p132 = scmp.eq.s32.totalorder %s20, 0
      %p133 = por %p131, %p132
      %p134 = scmp.ne.s32.totalorder %s120, %s121
      %p135 = scmp.eq.s32.totalorder %s21, 1
      %p136 = por %p134, %p135
      %p138 = scmp.ne.s32.totalorder %s121, %s137
      %p139 = scmp.eq.s32.totalorder %s21, 0
      %p140 = por %p138, %p139
      %p141 = scmp.le.s32.totalorder 1, %s15
      %p142 = scmp.lt.s32.totalorder %s15, 3
      %p143 = pnand %p141, %p142
      %p144 = pneg %p143
      // Predicated region
      $region9: #{encoder_forward.1} parent=5 // pred_check
        _
      $region10: #{encoder_forward.1} parent=5 // pred_check_branch
        %146 = sbr.rel (%p143) target = $region12
      $region11: #{encoder_forward.1} parent=5 // pred_region
        %s147 = ssub.s32 %s15, 1
        // Predicated region
        $region13: #{encoder_forward.1} parent=11 // pred_check
          %p148 = pneg %p79
        $region14: #{encoder_forward.1} parent=11 // pred_check_branch
          %150 = sbr.rel (%p148) target = $region16
        $region15: #{encoder_forward.1} parent=11 // pred_region
          %p151 = scmp.lt.s32.totalorder %s25, 0
          %s152 = scalar_select %p151, %s25, 0
          %s153 = smul.addr %s152, 4
          %s154 = scalar_lea.vmem %s1, %s153
        $region16: #{encoder_forward.1} parent=11 // pred_fallthru
          _
        // Predicated region
        $region17: #{encoder_forward.1} parent=11 // pred_check
          %p155 = pneg %p105
        $region18: #{encoder_forward.1} parent=11 // pred_check_branch
          %157 = sbr.rel (%p155) target = $region20
        $region19: #{encoder_forward.1} parent=11 // pred_region
          %p158 = scmp.lt.s32.totalorder %s25, 0
          %s159 = scalar_select %p158, %s25, 0
          %s160 = scalar_lea.vmem %s2, %s159
        $region20: #{encoder_forward.1} parent=11 // pred_fallthru
          _
      $region12: #{encoder_forward.1} parent=5 // pred_fallthru
        _
      %p161 = scmp.lt.s32.totalorder %s15, 2
      // Predicated region
      $region21: #{encoder_forward.1} parent=5 // pred_check
        %p162 = pneg %p161
      $region22: #{encoder_forward.1} parent=5 // pred_check_branch
        %164 = sbr.rel (%p162) target = $region24
      $region23: #{encoder_forward.1} parent=5 // pred_region
        // Predicated region
        $region25: #{encoder_forward.1} parent=23 // pred_check
          %p165 = pneg %p47
        $region26: #{encoder_forward.1} parent=23 // pred_check_branch
          %167 = sbr.rel (%p165) target = $region28
        $region27: #{encoder_forward.1} parent=23 // pred_region
          %s168 = sand.u32 %s37, 1
          %s169 = scalar_lea.sflag [#allocation3], %s168
          %s170 = sand.u32 %s37, 1
          %s171 = smul.addr %s170, 256
          %s172 = scalar_lea.vmem [#allocation2], %s171
          %s173 = smul.u32 16, %s22
          %s175 = ssub.s32 4096, 4096
          %176 = vsyncadd %s169, %s175
          %s177 = smul.addr %s173, 2
          %s178 = smul.addr %s177, 128
          %s179 = scalar_lea.hbm %s0, %s178
          %s180 = sshll.u32 %s172, 4
          %s181 = int_to_ptr.vmem [resolvable:$true] %s180
          %186 = dma.hbm_to_vmem [thread:$0]  %s179, 4096, %s181, %s169, 256, 256, 16
        $region28: #{encoder_forward.1} parent=23 // pred_fallthru
          _
      $region24: #{encoder_forward.1} parent=5 // pred_fallthru
        _
      %p187 = scmp.le.s32.totalorder 1, %s15
      %p188 = scmp.lt.s32.totalorder %s15, 3
      %p189 = pnand %p187, %p188
      %p190 = pneg %p189
      // Predicated region
      $region29: #{encoder_forward.1} parent=5 // pred_check
        _
      $region30: #{encoder_forward.1} parent=5 // pred_check_branch
        %192 = sbr.rel (%p189) target = $region32
      $region31: #{encoder_forward.1} parent=5 // pred_region
        %s193 = ssub.s32 %s15, 1
        %s194 = sand.u32 %s40, 1
        %s195 = scalar_lea.sflag [#allocation3], %s194
        %s196 = sand.u32 %s40, 1
        %s197 = smul.addr %s196, 256
        %s198 = scalar_lea.vmem [#allocation2], %s197
        // Predicated region
        $region33: #{encoder_forward.1} parent=31 // pred_check
          %p199 = pneg %p53
        $region34: #{encoder_forward.1} parent=31 // pred_check_branch
          %201 = sbr.rel (%p199) target = $region36
        $region35: #{encoder_forward.1} parent=31 // pred_region
          %202 = dma.done %s195, 4096
        $region36: #{encoder_forward.1} parent=31 // pred_fallthru
          _
        %s203 = sand.u32 %s40, 1
        %s204 = scalar_lea.sflag [#allocation3], %s203
        %s205 = sand.u32 %s40, 1
        %s206 = smul.addr %s205, 256
        %s207 = scalar_lea.vmem [#allocation2], %s206
        %p208 = pneg %p53
        %p209 = pneg %p50
        %p210 = scmp.lt.s32.totalorder %s25, 0
        %s211 = scalar_select %p210, %s25, 0
        %s212 = smul.addr %s211, 4
        %s213 = scalar_lea.vmem %s1, %s212
        %p214 = pneg %p79
        %p215 = pneg %p76
        %p216 = scmp.lt.s32.totalorder %s25, 0
        %s217 = scalar_select %p216, %s25, 0
        %s218 = scalar_lea.vmem %s2, %s217
        %p219 = pneg %p105
        %p220 = pneg %p102
        %p221 = pneg %p133
        %p222 = pneg %p130
        %s223 = sand.u32 %s120, 1
        %s224 = scalar_lea.sflag [#allocation4], %s223
        %s225 = sand.u32 %s120, 1
        %s226 = smul.addr %s225, 128
        %s227 = scalar_lea.vmem [#allocation5], %s226
        %s228 = smul.u32 16, %s24
        %p229 = scmp.lt.s32.totalorder %s25, 0
        %s230 = scalar_select %p229, %s25, 0
        %s231 = smul.addr %s230, 4
        %s232 = scalar_lea.vmem %s1, %s231
        %p233 = scmp.lt.s32.totalorder %s25, 0
        %s234 = scalar_select %p233, %s25, 0
        %s235 = scalar_lea.vmem %s2, %s234
        %s236 = smul.u32 16, %s24
        %v238 = vld [vmem:[%s198] sm:$0xff]
        %v239 = vld [vmem:[%s198 + $0x8] sm:$0xff]
        %v240 = vld [vmem:[%s198 + $0x10] sm:$0xff]
        %v241 = vld [vmem:[%s198 + $0x18] sm:$0xff]
        %v242 = vld [vmem:[%s198 + $0x20] sm:$0xff]
        %v243 = vld [vmem:[%s198 + $0x28] sm:$0xff]
        %v244 = vld [vmem:[%s198 + $0x30] sm:$0xff]
        %v245 = vld [vmem:[%s198 + $0x38] sm:$0xff]
        %v246 = vld [vmem:[%s198 + $0x40] sm:$0xff]
        %v247 = vld [vmem:[%s198 + $0x48] sm:$0xff]
        %v248 = vld [vmem:[%s198 + $0x50] sm:$0xff]
        %v249 = vld [vmem:[%s198 + $0x58] sm:$0xff]
        %v250 = vld [vmem:[%s198 + $0x60] sm:$0xff]
        %v251 = vld [vmem:[%s198 + $0x68] sm:$0xff]
        %v252 = vld [vmem:[%s198 + $0x70] sm:$0xff]
        %v253 = vld [vmem:[%s198 + $0x78] sm:$0xff]
        %v254 = vld [vmem:[%s198 + $0x80] sm:$0xff]
        %v255 = vld [vmem:[%s198 + $0x88] sm:$0xff]
        %v256 = vld [vmem:[%s198 + $0x90] sm:$0xff]
        %v257 = vld [vmem:[%s198 + $0x98] sm:$0xff]
        %v258 = vld [vmem:[%s198 + $0xa0] sm:$0xff]
        %v259 = vld [vmem:[%s198 + $0xa8] sm:$0xff]
        %v260 = vld [vmem:[%s198 + $0xb0] sm:$0xff]
        %v261 = vld [vmem:[%s198 + $0xb8] sm:$0xff]
        %v262 = vld [vmem:[%s198 + $0xc0] sm:$0xff]
        %v263 = vld [vmem:[%s198 + $0xc8] sm:$0xff]
        %v264 = vld [vmem:[%s198 + $0xd0] sm:$0xff]
        %v265 = vld [vmem:[%s198 + $0xd8] sm:$0xff]
        %v266 = vld [vmem:[%s198 + $0xe0] sm:$0xff]
        %v267 = vld [vmem:[%s198 + $0xe8] sm:$0xff]
        %v268 = vld [vmem:[%s198 + $0xf0] sm:$0xff]
        %v269 = vld [vmem:[%s198 + $0xf8] sm:$0xff]
        %v270 = vpack.c.bf16 %v240, %v238
        %v271 = vpack.c.bf16 %v241, %v239
        %v272 = vpack.c.bf16 %v244, %v242
        %v273 = vpack.c.bf16 %v245, %v243
        %v274 = vpack.c.bf16 %v248, %v246
        %v275 = vpack.c.bf16 %v249, %v247
        %v276 = vpack.c.bf16 %v252, %v250
        %v277 = vpack.c.bf16 %v253, %v251
        %v278 = vpack.c.bf16 %v256, %v254
        %v279 = vpack.c.bf16 %v257, %v255
        %v280 = vpack.c.bf16 %v260, %v258
        %v281 = vpack.c.bf16 %v261, %v259
        %v282 = vpack.c.bf16 %v264, %v262
        %v283 = vpack.c.bf16 %v265, %v263
        %v284 = vpack.c.bf16 %v268, %v266
        %v285 = vpack.c.bf16 %v269, %v267
        %v286 = vld [vmem:[%s232] sm:$0xf]
        %v287 = vld [vmem:[%s232 + $0x4] sm:$0xf]
        %v288 = vld [vmem:[%s232 + $0x8] sm:$0xf]
        %v289 = vld [vmem:[%s232 + $0xc] sm:$0xf]
        %v290 = vld [vmem:[%s232 + $0x10] sm:$0xf]
        %v291 = vld [vmem:[%s232 + $0x14] sm:$0xf]
        %v292 = vld [vmem:[%s232 + $0x18] sm:$0xf]
        %v293 = vld [vmem:[%s232 + $0x1c] sm:$0xf]
        %v294 = vld [vmem:[%s232 + $0x20] sm:$0xf]
        %v295 = vld [vmem:[%s232 + $0x24] sm:$0xf]
        %v296 = vld [vmem:[%s232 + $0x28] sm:$0xf]
        %v297 = vld [vmem:[%s232 + $0x2c] sm:$0xf]
        %v298 = vld [vmem:[%s232 + $0x30] sm:$0xf]
        %v299 = vld [vmem:[%s232 + $0x34] sm:$0xf]
        %v300 = vld [vmem:[%s232 + $0x38] sm:$0xf]
        %v301 = vld [vmem:[%s232 + $0x3c] sm:$0xf]
        %v302 = vld [vmem:[%s232 + $0x40] sm:$0xf]
        %v303 = vld [vmem:[%s232 + $0x44] sm:$0xf]
        %v304 = vld [vmem:[%s232 + $0x48] sm:$0xf]
        %v305 = vld [vmem:[%s232 + $0x4c] sm:$0xf]
        %v306 = vld [vmem:[%s232 + $0x50] sm:$0xf]
        %v307 = vld [vmem:[%s232 + $0x54] sm:$0xf]
        %v308 = vld [vmem:[%s232 + $0x58] sm:$0xf]
        %v309 = vld [vmem:[%s232 + $0x5c] sm:$0xf]
        %v310 = vld [vmem:[%s232 + $0x60] sm:$0xf]
        %v311 = vld [vmem:[%s232 + $0x64] sm:$0xf]
        %v312 = vld [vmem:[%s232 + $0x68] sm:$0xf]
        %v313 = vld [vmem:[%s232 + $0x6c] sm:$0xf]
        %v314 = vld [vmem:[%s232 + $0x70] sm:$0xf]
        %v315 = vld [vmem:[%s232 + $0x74] sm:$0xf]
        %v316 = vld [vmem:[%s232 + $0x78] sm:$0xf]
        %v317 = vld [vmem:[%s232 + $0x7c] sm:$0xf]
        %v318 = vld [vmem:[%s235] sm:$0x1]
        %v320 = vlaneseq
        %v321 = vshrl.u32 %v320, 7
        %v322 = vsub.s32 0, %v321
        %v323 = vrot.slane %v318, %v322
        %v357 = vunpack.c.l.b16 %v286
        %v358 = vunpack.c.l.b16 %v287
        %v359 = vunpack.c.l.b16 %v288
        %v360 = vunpack.c.l.b16 %v289
        %v361 = vunpack.c.l.b16 %v290
        %v362 = vunpack.c.l.b16 %v291
        %v363 = vunpack.c.l.b16 %v292
        %v364 = vunpack.c.l.b16 %v293
        %v365 = vunpack.c.l.b16 %v294
        %v366 = vunpack.c.l.b16 %v295
        %v367 = vunpack.c.l.b16 %v296
        %v368 = vunpack.c.l.b16 %v297
        %v369 = vunpack.c.l.b16 %v298
        %v370 = vunpack.c.l.b16 %v299
        %v371 = vunpack.c.l.b16 %v300
        %v372 = vunpack.c.l.b16 %v301
        %v373 = vunpack.c.l.b16 %v302
        %v374 = vunpack.c.l.b16 %v303
        %v375 = vunpack.c.l.b16 %v304
        %v376 = vunpack.c.l.b16 %v305
        %v377 = vunpack.c.l.b16 %v306
        %v378 = vunpack.c.l.b16 %v307
        %v379 = vunpack.c.l.b16 %v308
        %v380 = vunpack.c.l.b16 %v309
        %v381 = vunpack.c.l.b16 %v310
        %v382 = vunpack.c.l.b16 %v311
        %v383 = vunpack.c.l.b16 %v312
        %v384 = vunpack.c.l.b16 %v313
        %v385 = vunpack.c.l.b16 %v314
        %v386 = vunpack.c.l.b16 %v315
        %v387 = vunpack.c.l.b16 %v316
        %v388 = vunpack.c.l.b16 %v317
        %v389 = vpack.c.b16 %v358, %v357
        %v390 = vpack.c.b16 %v360, %v359
        %v391 = vpack.c.b16 %v362, %v361
        %v392 = vpack.c.b16 %v364, %v363
        %v393 = vpack.c.b16 %v366, %v365
        %v394 = vpack.c.b16 %v368, %v367
        %v395 = vpack.c.b16 %v370, %v369
        %v396 = vpack.c.b16 %v372, %v371
        %v397 = vpack.c.b16 %v374, %v373
        %v398 = vpack.c.b16 %v376, %v375
        %v399 = vpack.c.b16 %v378, %v377
        %v400 = vpack.c.b16 %v380, %v379
        %v401 = vpack.c.b16 %v382, %v381
        %v402 = vpack.c.b16 %v384, %v383
        %v403 = vpack.c.b16 %v386, %v385
        %v404 = vpack.c.b16 %v388, %v387
        %421 = vmatprep.subr.bf16.mxu0 0
        %422 = vmatpush1.bf16.msra.mxu0 %v396
        %423 = vmatprep.subr.bf16.mxu0 0
        %424 = vmatpush1.bf16.msra.mxu0 %v395
        %425 = vmatprep.subr.bf16.mxu0 0
        %426 = vmatpush1.bf16.msra.mxu0 %v394
        %427 = vmatprep.subr.bf16.mxu0 0
        %428 = vmatpush1.bf16.msra.mxu0 %v393
        %429 = vmatprep.subr.bf16.mxu0 0
        %430 = vmatpush1.bf16.msra.mxu0 %v392
        %431 = vmatprep.subr.bf16.mxu0 0
        %432 = vmatpush1.bf16.msra.mxu0 %v391
        %433 = vmatprep.subr.bf16.mxu0 0
        %434 = vmatpush1.bf16.msra.mxu0 %v390
        %435 = vmatprep.subr.bf16.mxu0 0
        %436 = vmatpush1.bf16.msra.mxu0 %v389
        %437 = vmatprep.subr.bf16.mxu0 0
        %438 = vmatpush2.bf16.msra.mxu0 %v404
        %439 = vmatprep.subr.bf16.mxu0 0
        %440 = vmatpush2.bf16.msra.mxu0 %v403
        %441 = vmatprep.subr.bf16.mxu0 0
        %442 = vmatpush2.bf16.msra.mxu0 %v402
        %443 = vmatprep.subr.bf16.mxu0 0
        %444 = vmatpush2.bf16.msra.mxu0 %v401
        %445 = vmatprep.subr.bf16.mxu0 0
        %446 = vmatpush2.bf16.msra.mxu0 %v400
        %447 = vmatprep.subr.bf16.mxu0 0
        %448 = vmatpush2.bf16.msra.mxu0 %v399
        %449 = vmatprep.subr.bf16.mxu0 0
        %450 = vmatpush2.bf16.msra.mxu0 %v398
        %451 = vmatprep.subr.bf16.mxu0 0
        %452 = vmatpush2.bf16.msra.mxu0 %v397
        %453 = vmatprep.mubr.bf16.mxu0 %v271
        %454 = vmatmul.mubr.bf16.gmra.mxu0 %v270
        %v455 = vpop.f32.mrf.mxu0
        %v456 = vadd.f32 %v323, %v455
        %v457 = vpop.f32.mrf.mxu0
        %v458 = vpop.f32.mrf.mxu0
        %v459 = vadd.f32 %v323, %v458
        %v460 = vpop.f32.mrf.mxu0
        %461 = vmatprep.mubr.bf16.mxu0 %v273
        %462 = vmatmul.mubr.bf16.gmra.mxu0 %v272
        %v463 = vpop.f32.mrf.mxu0
        %v464 = vadd.f32 %v323, %v463
        %v465 = vpop.f32.mrf.mxu0
        %v466 = vpop.f32.mrf.mxu0
        %v467 = vadd.f32 %v323, %v466
        %v468 = vpop.f32.mrf.mxu0
        %469 = vmatprep.mubr.bf16.mxu0 %v275
        %470 = vmatmul.mubr.bf16.gmra.mxu0 %v274
        %v471 = vpop.f32.mrf.mxu0
        %v472 = vadd.f32 %v323, %v471
        %v473 = vpop.f32.mrf.mxu0
        %v474 = vpop.f32.mrf.mxu0
        %v475 = vadd.f32 %v323, %v474
        %v476 = vpop.f32.mrf.mxu0
        %477 = vmatprep.mubr.bf16.mxu0 %v277
        %478 = vmatmul.mubr.bf16.gmra.mxu0 %v276
        %v479 = vpop.f32.mrf.mxu0
        %v480 = vadd.f32 %v323, %v479
        %v481 = vpop.f32.mrf.mxu0
        %v482 = vpop.f32.mrf.mxu0
        %v483 = vadd.f32 %v323, %v482
        %v484 = vpop.f32.mrf.mxu0
        %485 = vmatprep.mubr.bf16.mxu0 %v279
        %486 = vmatmul.mubr.bf16.gmra.mxu0 %v278
        %v487 = vpop.f32.mrf.mxu0
        %v488 = vadd.f32 %v323, %v487
        %v489 = vpop.f32.mrf.mxu0
        %v490 = vpop.f32.mrf.mxu0
        %v491 = vadd.f32 %v323, %v490
        %v492 = vpop.f32.mrf.mxu0
        %493 = vmatprep.mubr.bf16.mxu0 %v281
        %494 = vmatmul.mubr.bf16.gmra.mxu0 %v280
        %v495 = vpop.f32.mrf.mxu0
        %v496 = vadd.f32 %v323, %v495
        %v497 = vpop.f32.mrf.mxu0
        %v498 = vpop.f32.mrf.mxu0
        %v499 = vadd.f32 %v323, %v498
        %v500 = vpop.f32.mrf.mxu0
        %501 = vmatprep.mubr.bf16.mxu0 %v283
        %502 = vmatmul.mubr.bf16.gmra.mxu0 %v282
        %v503 = vpop.f32.mrf.mxu0
        %v504 = vadd.f32 %v323, %v503
        %v505 = vpop.f32.mrf.mxu0
        %v506 = vpop.f32.mrf.mxu0
        %v507 = vadd.f32 %v323, %v506
        %v508 = vpop.f32.mrf.mxu0
        %509 = vmatprep.mubr.bf16.mxu0 %v285
        %510 = vmatmul.mubr.bf16.gmra.mxu0 %v284
        %v511 = vpop.f32.mrf.mxu0
        %v512 = vadd.f32 %v323, %v511
        %v513 = vpop.f32.mrf.mxu0
        %v514 = vpop.f32.mrf.mxu0
        %v515 = vadd.f32 %v323, %v514
        %v516 = vpop.f32.mrf.mxu0
        %517 = vdwg.mxu0
        %v518 = vmax.f32 %v456, 0.0
        %v519 = vmax.f32 %v459, 0.0
        %v520 = vmax.f32 %v464, 0.0
        %v521 = vmax.f32 %v467, 0.0
        %v522 = vmax.f32 %v472, 0.0
        %v523 = vmax.f32 %v475, 0.0
        %v524 = vmax.f32 %v480, 0.0
        %v525 = vmax.f32 %v483, 0.0
        %v526 = vmax.f32 %v488, 0.0
        %v527 = vmax.f32 %v491, 0.0
        %v528 = vmax.f32 %v496, 0.0
        %v529 = vmax.f32 %v499, 0.0
        %v530 = vmax.f32 %v504, 0.0
        %v531 = vmax.f32 %v507, 0.0
        %v532 = vmax.f32 %v512, 0.0
        %v533 = vmax.f32 %v515, 0.0
        %534 = vst [vmem:[%s227] sm:$0xff] %v518
        %535 = vst [vmem:[%s227 + $0x8] sm:$0xff] %v519
        %536 = vst [vmem:[%s227 + $0x10] sm:$0xff] %v520
        %537 = vst [vmem:[%s227 + $0x18] sm:$0xff] %v521
        %538 = vst [vmem:[%s227 + $0x20] sm:$0xff] %v522
        %539 = vst [vmem:[%s227 + $0x28] sm:$0xff] %v523
        %540 = vst [vmem:[%s227 + $0x30] sm:$0xff] %v524
        %541 = vst [vmem:[%s227 + $0x38] sm:$0xff] %v525
        %542 = vst [vmem:[%s227 + $0x40] sm:$0xff] %v526
        %543 = vst [vmem:[%s227 + $0x48] sm:$0xff] %v527
        %544 = vst [vmem:[%s227 + $0x50] sm:$0xff] %v528
        %545 = vst [vmem:[%s227 + $0x58] sm:$0xff] %v529
        %546 = vst [vmem:[%s227 + $0x60] sm:$0xff] %v530
        %547 = vst [vmem:[%s227 + $0x68] sm:$0xff] %v531
        %548 = vst [vmem:[%s227 + $0x70] sm:$0xff] %v532
        %549 = vst [vmem:[%s227 + $0x78] sm:$0xff] %v533
        %s550 = sand.u32 %s120, 1
        %s551 = scalar_lea.sflag [#allocation4], %s550
        %s552 = sand.u32 %s120, 1
        %s553 = smul.addr %s552, 128
        %s554 = scalar_lea.vmem [#allocation5], %s553
        // Predicated region
        $region37: #{encoder_forward.1} parent=31 // pred_check
          %p555 = pneg %p130
        $region38: #{encoder_forward.1} parent=31 // pred_check_branch
          %557 = sbr.rel (%p555) target = $region40
        $region39: #{encoder_forward.1} parent=31 // pred_region
          %s558 = smul.u32 16, %s24
          %s560 = ssub.s32 2048, 2048
          %561 = vsyncadd %s551, %s560
          %s562 = sadd.s32 %s25, %s558
          %s563 = smul.addr %s562, 128
          %s564 = scalar_lea.hbm %s3, %s563
          %s565 = sshll.u32 %s554, 4
          %s566 = int_to_ptr.vmem [resolvable:$true] %s565
          %571 = dma.vmem_to_hbm [thread:$0]  %s566, 2048, %s564, %s551, 128, 128, 8
        $region40: #{encoder_forward.1} parent=31 // pred_fallthru
          _
      $region32: #{encoder_forward.1} parent=5 // pred_fallthru
        _
      %p572 = scmp.le.s32.totalorder 2, %s15
      // Predicated region
      $region41: #{encoder_forward.1} parent=5 // pred_check
        %p573 = pneg %p572
      $region42: #{encoder_forward.1} parent=5 // pred_check_branch
        %575 = sbr.rel (%p573) target = $region44
      $region43: #{encoder_forward.1} parent=5 // pred_region
        %s576 = ssub.s32 %s15, 2
        // Predicated region
        $region45: #{encoder_forward.1} parent=43 // pred_check
          %p577 = pneg %p136
        $region46: #{encoder_forward.1} parent=43 // pred_check_branch
          %579 = sbr.rel (%p577) target = $region48
        $region47: #{encoder_forward.1} parent=43 // pred_region
          %s580 = sand.u32 %s121, 1
          %s581 = scalar_lea.sflag [#allocation4], %s580
          %s582 = sand.u32 %s121, 1
          %s583 = smul.addr %s582, 128
          %s584 = scalar_lea.vmem [#allocation5], %s583
          %585 = dma.done %s581, 2048
        $region48: #{encoder_forward.1} parent=43 // pred_fallthru
          _
      $region44: #{encoder_forward.1} parent=5 // pred_fallthru
        _
    $region6: #{encoder_forward.1} parent=1 // loop_footer
      %s19 = sadd.s32 1, %s15
    $region7: #{encoder_forward.1} parent=1 // loop_footer_branch
      %14 = sbr.rel target = $region3
    $region8: #{encoder_forward.1} parent=1 // loop_exit
      _
    %586 = vsyncpa [#allocation3], 1
    %s587 = scalar_lea.sflag [#allocation3], 1
    %588 = vsyncpa %s587, 1
    %589 = vsyncpa [#allocation4], 1
    %s590 = scalar_lea.sflag [#allocation4], 1
    %591 = vsyncpa %s590, 1

</llo_original>
